<compile_context>
chip_gen: v7x
topology: tpu7x:2x2x1
jax: 0.10.0
libtpu: 0.0.40
codegen_flags: <defaults>
</compile_context>

<pallas_src>
import functools
import math

import jax
import jax.numpy as jnp
from jax.experimental import pallas as pl
from jax.experimental.pallas import tpu as pltpu

_NEG_BIAS = -1e30      # bias for padded support rows -> exp() == 0 exactly


def _round_up(x, m):
    return ((x + m - 1) // m) * m


def _cdiv(a, b):
    return (a + b - 1) // b


def _patch_fsl_kernel(sup_ref, qryT_ref, v_ref, out_ref, *, ks_pad):
    """One (query-tile, way-tile) grid step.

    sup_ref : [w_blk*ks_pad, D]  pre-normalized support, pre-scaled by 1/tau
    qryT_ref: [D, tn]            pre-normalized query, pre-transposed
    v_ref   : [w_blk*ks_pad, 1]  v/tau - bound   (padded rows = -1e30)
    out_ref : [w_blk, tn]        sum over the way's support rows of exp(pred - bound)
    """
    # Main similarity matmul on the MXU (bf16 inputs by default, f32 accumulate).
    c = jnp.dot(sup_ref[...], qryT_ref[...],
                preferred_element_type=jnp.float32)            # [tm, tn]
    # 1/tau and the LSE shift are already folded into the operands.
    e = jnp.exp(c + v_ref[...])                                # f32 exp (EUP)
    # Way-aligned layout: the per-way segment sum is a plain sublane reduction
    # over each contiguous ks_pad-row block (no MXU indicator matmul).
    w_blk = out_ref.shape[0]
    for w in range(w_blk):                                     # static unroll, small
        out_ref[w:w + 1, :] = jnp.sum(e[w * ks_pad:(w + 1) * ks_pad, :],
                                      axis=0, keepdims=True)


@functools.partial(jax.jit,
                   static_argnames=("n_way", "k_shot", "tn", "ways_per_tile",
                                    "matmul_dtype"))
def patch_fsl_forward(support_emb_key, support_emb_query, query_emb,
                      support_labels, *, v, log_tau_c, n_way, k_shot,
                      tn=None, ways_per_tile=None, matmul_dtype=jnp.bfloat16):
    """Mirrors PatchFSL.forward (phase='infer').  Returns [n_query, n_way] logits."""
    del support_emb_query, support_labels       # unused by the reference forward()

    n_sup, sup_seq, d = support_emb_key.shape
    n_query, q_seq, _ = query_emb.shape
    ks = k_shot * sup_seq                       # support tokens per way
    n_q_tok = n_query * q_seq
    assert n_sup == n_way * k_shot, "support must hold n_way*k_shot samples (way-major)"

    inv_tau = jnp.exp(-jnp.asarray(log_tau_c, jnp.float32).reshape(()))
    v = jnp.asarray(v, jnp.float32).reshape(n_way, ks)
    # Static upper bound on pred = (cos + v)/tau (|cos| <= 1) => exp args <= ~0.
    # TODO(synk): if the learned tau can become very small (<~0.02), switch to a
    # per-group running max to avoid group-sum underflow in the exp-space sums.
    bound = inv_tau * (1.0 + jnp.max(jnp.abs(v)))

    # ---- one XLA preprocessing pass: normalize, scale, pad, transpose ---------
    def _normalize(x):                          # x / max(||x||, 1e-8)
        n = jnp.sqrt(jnp.sum(x * x, axis=-1, keepdims=True))
        return x / jnp.maximum(n, 1e-8)

    ks_pad = _round_up(ks, 8)
    sup = _normalize(support_emb_key.astype(jnp.float32).reshape(n_way, ks, d))
    sup = sup * inv_tau
    qry = _normalize(query_emb.astype(jnp.float32).reshape(n_q_tok, d))

    # ---- way (support) tiling --------------------------------------------------
    itemsize = jnp.dtype(matmul_dtype).itemsize
    if ways_per_tile is None:
        budget_rows = (8 << 20) // max(d * itemsize, 1)     # ~8 MiB support / tile
        if n_way * ks_pad <= max(budget_rows, ks_pad):
            ways_per_tile = n_way                           # support fully resident
        else:
            ways_per_tile = max(8, ((budget_rows // ks_pad) // 8) * 8)
    w_blk = min(ways_per_tile, n_way)
    if w_blk < n_way:
        assert w_blk % 8 == 0, "ways_per_tile must be a multiple of 8 when < n_way"
        n_way_pad = _round_up(n_way, w_blk)
    else:
        w_blk = n_way
        n_way_pad = n_way
    ns_tiles = n_way_pad // w_blk
    tm = w_blk * ks_pad
    # TODO(synk): a single way too large for VMEM would need a reduction grid axis.

    # ---- query tiling ----------------------------------------------------------
    if tn is None:
        tn = min(512, _round_up(n_q_tok, 128))
        # megacore (v7x): prefer >= 2 parallel blocks when the episode allows it.
        if ns_tiles == 1 and n_q_tok > 128 and _round_up(n_q_tok, tn) // tn < 2:
            tn = _round_up(_cdiv(n_q_tok, 2), 128)
    tn = _round_up(tn, 128)
    nq_pad = _round_up(n_q_tok, tn)
    nq_tiles = nq_pad // tn

    # ---- padded kernel operands ------------------------------------------------
    sup = jnp.pad(sup, ((0, n_way_pad - n_way), (0, ks_pad - ks), (0, 0)))
    sup_flat = sup.reshape(n_way_pad * ks_pad, d).astype(matmul_dtype)
    qryT = jnp.pad(qry.T, ((0, 0), (0, nq_pad - n_q_tok))).astype(matmul_dtype)
    v_shift = jnp.pad(v * inv_tau - bound,
                      ((0, n_way_pad - n_way), (0, ks_pad - ks)),
                      constant_values=_NEG_BIAS)
    v_flat = v_shift.reshape(n_way_pad * ks_pad, 1)

    # ---- VMEM budget: stay below physical capacity (64 MiB on v7x) -------------
    try:
        vmem_cap = int(pltpu.get_tpu_info().vmem_capacity_bytes)
    except Exception:
        vmem_cap = 64 << 20
    vmem_est = (2 * (tm * d + d * tn) * itemsize + 2 * tm * 4
                + 2 * w_blk * tn * 4 + 2 * tm * tn * 4 + (4 << 20))
    vmem_limit = int(min(max(vmem_est, 32 << 20), int(vmem_cap * 0.8)))

    kernel = functools.partial(_patch_fsl_kernel, ks_pad=ks_pad)
    s1 = pl.pallas_call(
        kernel,
        out_shape=jax.ShapeDtypeStruct((n_way_pad, nq_pad), jnp.float32),
        grid=(nq_tiles, ns_tiles),
        in_specs=[
            pl.BlockSpec((tm, d), lambda qi, si: (si, 0)),    # way-aligned support
            pl.BlockSpec((d, tn), lambda qi, si: (0, qi)),    # pre-transposed query
            pl.BlockSpec((tm, 1), lambda qi, si: (si, 0)),    # shifted bias v
        ],
        out_specs=pl.BlockSpec((w_blk, tn), lambda qi, si: (si, qi)),
        compiler_params=pltpu.CompilerParams(
            dimension_semantics=("parallel", "parallel"),
            vmem_limit_bytes=vmem_limit),
    )(sup_flat, qryT, v_flat)

    # ---- tiny epilogue in XLA: per-query-sample sum, log, unshift --------------
    s1 = s1[:n_way, :n_q_tok].reshape(n_way, n_query, q_seq)
    logits = bound + jnp.log(jnp.sum(s1, axis=-1))            # [n_way, n_query]
    return logits.T                                           # [n_query, n_way]


def _reference_forward(support_emb_key, query_emb, v, log_tau, n_way, k_shot):
    """Pure-JAX (f32, HIGHEST precision) transliteration of PatchFSL._predict."""
    n_sup, sup_seq, _ = support_emb_key.shape
    n_query, q_seq, _ = query_emb.shape
    s = support_emb_key.reshape(n_sup * sup_seq, -1)
    s = s / jnp.maximum(jnp.linalg.norm(s, axis=1, keepdims=True), 1e-8)
    q = query_emb.reshape(n_query * q_seq, -1)
    q = q / jnp.maximum(jnp.linalg.norm(q, axis=1, keepdims=True), 1e-8)
    c = jnp.matmul(s, q.T, precision=jax.lax.Precision.HIGHEST)
    pred = c + v[:, None]
    pred = pred.reshape(n_way, k_shot * sup_seq, n_query, q_seq)
    pred = jnp.transpose(pred, (0, 1, 3, 2)).reshape(
        n_way, k_shot * sup_seq * q_seq, n_query)
    pred = pred / jnp.exp(log_tau)
    pred = jax.scipy.special.logsumexp(pred, axis=1)
    return pred.T


if __name__ == "__main__":
    similarity_temp = 0.0421
    log_tau_c = jnp.array([math.log(similarity_temp)], jnp.float32)
    # TODO(synk): online SGD adaptation (optimiser_online / block_mask / CE loss)
    # belongs to the 'adapt' phase and is not part of forward(); only 'infer'
    # prediction is implemented.

    def make_episode(seed, n_way, k_shot, sup_seq, q_seq, n_query, emb_dim):
        key = jax.random.PRNGKey(seed)
        k1, k2, k3, k4 = jax.random.split(key, 4)
        sup_key = jax.random.normal(k1, (n_way * k_shot, sup_seq, emb_dim), jnp.float32)
        sup_qry = jax.random.normal(k2, (n_way * k_shot, sup_seq, emb_dim), jnp.float32)
        qry = jax.random.normal(k3, (n_query, q_seq, emb_dim), jnp.float32)
        labels = jnp.repeat(jnp.arange(n_way, dtype=jnp.int32), k_shot)
        # Module __init__ uses v = zeros; a small non-zero v exercises the bias path.
        v = 0.1 * jax.random.normal(k4, (n_way * k_shot * sup_seq,), jnp.float32)
        return sup_key, sup_qry, qry, labels, v

    # Episode 1: single support tile, multiple query tiles, padded ks and N_q.
    n_way, k_shot, sup_seq, q_seq, n_query, emb_dim = 5, 1, 12, 16, 20, 128
    sup_key, sup_qry, qry, labels, v = make_episode(0, n_way, k_shot, sup_seq,
                                                    q_seq, n_query, emb_dim)
    ref = _reference_forward(sup_key, qry, v, log_tau_c[0], n_way, k_shot)

    out_f32 = patch_fsl_forward(sup_key, sup_qry, qry, labels, v=v,
                                log_tau_c=log_tau_c, n_way=n_way, k_shot=k_shot,
                                tn=128, matmul_dtype=jnp.float32)
    out_f32 = jax.block_until_ready(out_f32)
    assert out_f32.shape == (n_query, n_way), out_f32.shape
    assert jnp.allclose(out_f32, ref, rtol=5e-3, atol=5e-3), (
        "f32 path mismatch vs reference:\n%r\n%r" % (out_f32, ref))

    out_bf16 = patch_fsl_forward(sup_key, sup_qry, qry, labels, v=v,
                                 log_tau_c=log_tau_c, n_way=n_way, k_shot=k_shot)
    out_bf16 = jax.block_until_ready(out_bf16)
    assert out_bf16.shape == (n_query, n_way), out_bf16.shape
    assert jnp.allclose(out_bf16, ref, rtol=5e-2, atol=1e-1), (
        "bf16 path mismatch vs reference:\n%r\n%r" % (out_bf16, ref))

    # Episode 2: multiple way-tiles (forced), way padding across support tiles.
    n_way2, k_shot2, sup_seq2, q_seq2, n_query2 = 10, 2, 12, 16, 6
    sup_key2, sup_qry2, qry2, labels2, v2 = make_episode(1, n_way2, k_shot2,
                                                         sup_seq2, q_seq2,
                                                         n_query2, emb_dim)
    ref2 = _reference_forward(sup_key2, qry2, v2, log_tau_c[0], n_way2, k_shot2)
    out2 = patch_fsl_forward(sup_key2, sup_qry2, qry2, labels2, v=v2,
                             log_tau_c=log_tau_c, n_way=n_way2, k_shot=k_shot2,
                             ways_per_tile=8, matmul_dtype=jnp.float32)
    out2 = jax.block_until_ready(out2)
    assert out2.shape == (n_query2, n_way2), out2.shape
    assert jnp.allclose(out2, ref2, rtol=5e-3, atol=5e-3), (
        "multi-way-tile path mismatch vs reference:\n%r\n%r" % (out2, ref2))

    print("KERNEL_OK")
</pallas_src>

<mosaic_0001>
module attributes {stable_mosaic.version = 11 : i64} {
  func.func @_patch_fsl_kernel(%arg0: i32, %arg1: i32, %arg2: memref<80x128xf32, #tpu.memory_space<vmem>>, %arg3: memref<128x128xf32, #tpu.memory_space<vmem>>, %arg4: memref<80x1xf32, #tpu.memory_space<vmem>>, %arg5: memref<5x128xf32, #tpu.memory_space<vmem>>) attributes {dimension_semantics = [#tpu.dimension_semantics<parallel>, #tpu.dimension_semantics<parallel>], iteration_bounds = array<i64: 3, 1>, scalar_prefetch = 0 : i64, scratch_operands = 0 : i64, tpu.core_type = #tpu.core_type<tc>, window_params = [{transform_indices = @transform_0, window_bounds = array<i64: 80, 128>}, {transform_indices = @transform_1, window_bounds = array<i64: 128, 128>}, {transform_indices = @transform_2, window_bounds = array<i64: 80, 1>}, {transform_indices = @transform_3, window_bounds = array<i64: 5, 128>}]} {
    %c0 = arith.constant 0 : index
    %c0_0 = arith.constant 0 : index
    %0 = vector.load %arg2[%c0, %c0_0] : memref<80x128xf32, #tpu.memory_space<vmem>>, vector<80x128xf32>
    %c0_1 = arith.constant 0 : index
    %c0_2 = arith.constant 0 : index
    %1 = vector.load %arg3[%c0_1, %c0_2] : memref<128x128xf32, #tpu.memory_space<vmem>>, vector<128x128xf32>
    %cst = arith.constant dense<0.000000e+00> : vector<80x128xf32>
    %2 = tpu.matmul %0, %1, %cst {dimension_numbers = #tpu.dot_dimension_numbers<[1], [0], [0], [1], [0, 0, 1, 1], [], []>} : vector<80x128xf32>, vector<128x128xf32>, vector<80x128xf32> -> vector<80x128xf32>
    %c0_3 = arith.constant 0 : index
    %c0_4 = arith.constant 0 : index
    %3 = vector.load %arg4[%c0_3, %c0_4] : memref<80x1xf32, #tpu.memory_space<vmem>>, vector<80x1xf32>
    %4 = vector.broadcast %3 : vector<80x1xf32> to vector<80x128xf32>
    %5 = arith.addf %2, %4 : vector<80x128xf32>
    %6 = math.exp %5 : vector<80x128xf32>
    %7 = vector.extract_strided_slice %6 {offsets = [0, 0], sizes = [16, 128], strides = [1, 1]} : vector<80x128xf32> to vector<16x128xf32>
    %cst_5 = arith.constant dense<0.000000e+00> : vector<128xf32>
    %8 = vector.multi_reduction <add>, %7, %cst_5 [0] : vector<16x128xf32> to vector<128xf32>
    %9 = vector.shape_cast %8 : vector<128xf32> to vector<1x128xf32>
    %c0_6 = arith.constant 0 : index
    %c0_7 = arith.constant 0 : index
    %10 = vector.load %arg5[%c0_6, %c0_7] : memref<5x128xf32, #tpu.memory_space<vmem>>, vector<1x128xf32>
    tpu.vector_store %arg5[%c0_6, %c0_7], %9 {strides = array<i32>} : memref<5x128xf32, #tpu.memory_space<vmem>>, vector<1x128xf32>,
    %11 = vector.extract_strided_slice %6 {offsets = [16, 0], sizes = [16, 128], strides = [1, 1]} : vector<80x128xf32> to vector<16x128xf32>
    %cst_8 = arith.constant dense<0.000000e+00> : vector<128xf32>
    %12 = vector.multi_reduction <add>, %11, %cst_8 [0] : vector<16x128xf32> to vector<128xf32>
    %13 = vector.shape_cast %12 : vector<128xf32> to vector<1x128xf32>
    %c1 = arith.constant 1 : index
    %c0_9 = arith.constant 0 : index
    %14 = vector.load %arg5[%c1, %c0_9] : memref<5x128xf32, #tpu.memory_space<vmem>>, vector<1x128xf32>
    tpu.vector_store %arg5[%c1, %c0_9], %13 {strides = array<i32>} : memref<5x128xf32, #tpu.memory_space<vmem>>, vector<1x128xf32>,
    %15 = vector.extract_strided_slice %6 {offsets = [32, 0], sizes = [16, 128], strides = [1, 1]} : vector<80x128xf32> to vector<16x128xf32>
    %cst_10 = arith.constant dense<0.000000e+00> : vector<128xf32>
    %16 = vector.multi_reduction <add>, %15, %cst_10 [0] : vector<16x128xf32> to vector<128xf32>
    %17 = vector.shape_cast %16 : vector<128xf32> to vector<1x128xf32>
    %c2 = arith.constant 2 : index
    %c0_11 = arith.constant 0 : index
    %18 = vector.load %arg5[%c2, %c0_11] : memref<5x128xf32, #tpu.memory_space<vmem>>, vector<1x128xf32>
    tpu.vector_store %arg5[%c2, %c0_11], %17 {strides = array<i32>} : memref<5x128xf32, #tpu.memory_space<vmem>>, vector<1x128xf32>,
    %19 = vector.extract_strided_slice %6 {offsets = [48, 0], sizes = [16, 128], strides = [1, 1]} : vector<80x128xf32> to vector<16x128xf32>
    %cst_12 = arith.constant dense<0.000000e+00> : vector<128xf32>
    %20 = vector.multi_reduction <add>, %19, %cst_12 [0] : vector<16x128xf32> to vector<128xf32>
    %21 = vector.shape_cast %20 : vector<128xf32> to vector<1x128xf32>
    %c3 = arith.constant 3 : index
    %c0_13 = arith.constant 0 : index
    %22 = vector.load %arg5[%c3, %c0_13] : memref<5x128xf32, #tpu.memory_space<vmem>>, vector<1x128xf32>
    tpu.vector_store %arg5[%c3, %c0_13], %21 {strides = array<i32>} : memref<5x128xf32, #tpu.memory_space<vmem>>, vector<1x128xf32>,
    %23 = vector.extract_strided_slice %6 {offsets = [64, 0], sizes = [16, 128], strides = [1, 1]} : vector<80x128xf32> to vector<16x128xf32>
    %cst_14 = arith.constant dense<0.000000e+00> : vector<128xf32>
    %24 = vector.multi_reduction <add>, %23, %cst_14 [0] : vector<16x128xf32> to vector<128xf32>
    %25 = vector.shape_cast %24 : vector<128xf32> to vector<1x128xf32>
    %c4 = arith.constant 4 : index
    %c0_15 = arith.constant 0 : index
    %26 = vector.load %arg5[%c4, %c0_15] : memref<5x128xf32, #tpu.memory_space<vmem>>, vector<1x128xf32>
    tpu.vector_store %arg5[%c4, %c0_15], %25 {strides = array<i32>} : memref<5x128xf32, #tpu.memory_space<vmem>>, vector<1x128xf32>,
    return
  }
  func.func @transform_0(%arg0: i32, %arg1: i32) -> (i32, i32) {
    %c0_i32 = arith.constant 0 : i32
    %c0_i32_0 = arith.constant 0 : i32
    return %arg1, %c0_i32 : i32, i32
  }
  func.func @transform_1(%arg0: i32, %arg1: i32) -> (i32, i32) {
    %c0_i32 = arith.constant 0 : i32
    %c0_i32_0 = arith.constant 0 : i32
    return %c0_i32, %arg0 : i32, i32
  }
  func.func @transform_2(%arg0: i32, %arg1: i32) -> (i32, i32) {
    %c0_i32 = arith.constant 0 : i32
    %c0_i32_0 = arith.constant 0 : i32
    return %arg1, %c0_i32 : i32, i32
  }
  func.func @transform_3(%arg0: i32, %arg1: i32) -> (i32, i32) {
    %c0_i32 = arith.constant 0 : i32
    return %arg1, %arg0 : i32, i32
  }
}

</mosaic_0001>

<llo_original>
// kernel: patch_fsl_forward.1
$region0: #{patch_fsl_forward.1}
  #allocation0 [shape = 'u32[]', space=smem, size = 0x4, offset = 0x4, fixed_abs, tag = 'smem constant byte address 0x4 - core index']
  #allocation1 [shape = 'u32[144,128]{1,0:T(1,128)}', space=vmem, size = 0x12000, scoped, tag = 'internal scratch']
  %s0 = inlined_call_operand.vmem [shape: f32[80,128], index: 0, kind: input, shape index: {}]
  %s1 = inlined_call_operand.vmem [shape: f32[128,384], index: 1, kind: input, shape index: {}]
  %s2 = inlined_call_operand.vmem [shape: f32[80,1], index: 2, kind: input, shape index: {}]
  %s3 = inlined_call_operand.vmem [shape: f32[5,384], index: 3, kind: output, shape index: {}]
  %s4 = sld [smem:[#allocation0]]
  $region83: #{patch_fsl_forward.1} parent=0
    _
  %s6 = ssub.s32 1, %s4
  %s7 = scalar_select 0, %s6, %s4
  $region1: #{patch_fsl_forward.1} parent=0
    #allocation2 [shape = 'u8[131072]{0}', space=vmem, size = 0x20000, scoped, tag = 'input window, operand 1']
    loop: start=0, step=1, limit=5
    $region2: #{patch_fsl_forward.1} parent=1 // loop_pre_header
      _
    $region3: #{patch_fsl_forward.1} parent=1 // loop_header
      %s9 = sphi 0, %s13
      %p10 = scmp.ge.s32.totalorder %s9, 5
      %s16 = sphi 0, %s28
      %s17 = sphi 0, %s24
      %s18 = sphi 0, %s16
      %s19 = sphi 0, %s17
      %s20 = sphi 0, %s18
      %s21 = sphi 0, %s19
      %s31 = sphi 0, %s33
      %s34 = sphi 0, %s31
      %s35 = sphi 0, %s34
      %s51 = sphi 0, %s35
      %s57 = sphi 0, %s59
      %s60 = sphi 0, %s57
      %s61 = sphi 0, %s60
      %s77 = sphi 0, %s61
      %s83 = sphi 0, %s85
      %s86 = sphi 0, %s83
      %s87 = sphi 0, %s86
      %s103 = sphi 0, %s87
      %s111 = sphi 0, %s113
      %s114 = sphi 0, %s111
      %s115 = sphi 0, %s114
      %s131 = sphi 0, %s115
    $region4: #{patch_fsl_forward.1} parent=1 // loop_header_branch
      %12 = sbr.rel (%p10) target = $region8
    $region5: #{patch_fsl_forward.1} parent=1 // loop_body
      %s14 = ssub.s32 %s9, 1
      %s15 = ssub.s32 %s9, 2
      %s22 = sadd.s32 1, %s17
      %p23 = scmp.ge.s32.totalorder %s22, 1
      %s24 = scalar_select %p23, 0, %s22
      %s25 = sadd.s32 1, %s16
      %s26 = scalar_select %p23, %s25, %s16
      %p27 = scmp.ge.s32.totalorder %s26, 3
      %s28 = scalar_select %p27, 0, %s26
      %s29 = ssub.s32 %s17, %s24
      %p30 = scmp.eq.s32.totalorder %s29, 0
      %s32 = sadd.s32 %s31, 1
      %s33 = scalar_select %p30, %s31, %s32
      %p36 = pneg %p30
      %p37 = scmp.eq.s32.totalorder %s9, 2
      %p38 = por %p36, %p37
      %p39 = scmp.ne.s32.totalorder %s31, %s34
      %p40 = scmp.eq.s32.totalorder %s9, 0
      %p41 = por %p39, %p40
      %p42 = scmp.ne.s32.totalorder %s31, %s34
      %p43 = scmp.eq.s32.totalorder %s14, 2
      %p44 = por %p42, %p43
      %p45 = scmp.ne.s32.totalorder %s34, %s35
      %p46 = scmp.eq.s32.totalorder %s14, 0
      %p47 = por %p45, %p46
      %p48 = scmp.ne.s32.totalorder %s34, %s35
      %p49 = scmp.eq.s32.totalorder %s15, 2
      %p50 = por %p48, %p49
      %p52 = scmp.ne.s32.totalorder %s35, %s51
      %p53 = scmp.eq.s32.totalorder %s15, 0
      %p54 = por %p52, %p53
      %s55 = ssub.s32 %s16, %s28
      %p56 = scmp.eq.s32.totalorder %s55, 0
      %s58 = sadd.s32 %s57, 1
      %s59 = scalar_select %p56, %s57, %s58
      %p62 = pneg %p56
      %p63 = scmp.eq.s32.totalorder %s9, 2
      %p64 = por %p62, %p63
      %p65 = scmp.ne.s32.totalorder %s57, %s60
      %p66 = scmp.eq.s32.totalorder %s9, 0
      %p67 = por %p65, %p66
      %p68 = scmp.ne.s32.totalorder %s57, %s60
      %p69 = scmp.eq.s32.totalorder %s14, 2
      %p70 = por %p68, %p69
      %p71 = scmp.ne.s32.totalorder %s60, %s61
      %p72 = scmp.eq.s32.totalorder %s14, 0
      %p73 = por %p71, %p72
      %p74 = scmp.ne.s32.totalorder %s60, %s61
      %p75 = scmp.eq.s32.totalorder %s15, 2
      %p76 = por %p74, %p75
      %p78 = scmp.ne.s32.totalorder %s61, %s77
      %p79 = scmp.eq.s32.totalorder %s15, 0
      %p80 = por %p78, %p79
      %s81 = ssub.s32 %s17, %s24
      %p82 = scmp.eq.s32.totalorder %s81, 0
      %s84 = sadd.s32 %s83, 1
      %s85 = scalar_select %p82, %s83, %s84
      %p88 = pneg %p82
      %p89 = scmp.eq.s32.totalorder %s9, 2
      %p90 = por %p88, %p89
      %p91 = scmp.ne.s32.totalorder %s83, %s86
      %p92 = scmp.eq.s32.totalorder %s9, 0
      %p93 = por %p91, %p92
      %p94 = scmp.ne.s32.totalorder %s83, %s86
      %p95 = scmp.eq.s32.totalorder %s14, 2
      %p96 = por %p94, %p95
      %p97 = scmp.ne.s32.totalorder %s86, %s87
      %p98 = scmp.eq.s32.totalorder %s14, 0
      %p99 = por %p97, %p98
      %p100 = scmp.ne.s32.totalorder %s86, %s87
      %p101 = scmp.eq.s32.totalorder %s15, 2
      %p102 = por %p100, %p101
      %p104 = scmp.ne.s32.totalorder %s87, %s103
      %p105 = scmp.eq.s32.totalorder %s15, 0
      %p106 = por %p104, %p105
      %s107 = ssub.s32 %s17, %s24
      %s108 = ssub.s32 %s16, %s28
      %s109 = sor.u32 %s107, %s108
      %p110 = scmp.eq.s32.totalorder %s109, 0
      %s112 = sadd.s32 %s111, 1
      %s113 = scalar_select %p110, %s111, %s112
      %p116 = pneg %p110
      %p117 = scmp.eq.s32.totalorder %s9, 2
      %p118 = por %p116, %p117
      %p119 = scmp.ne.s32.totalorder %s111, %s114
      %p120 = scmp.eq.s32.totalorder %s9, 0
      %p121 = por %p119, %p120
      %p122 = scmp.ne.s32.totalorder %s111, %s114
      %p123 = scmp.eq.s32.totalorder %s14, 2
      %p124 = por %p122, %p123
      %p125 = scmp.ne.s32.totalorder %s114, %s115
      %p126 = scmp.eq.s32.totalorder %s14, 0
      %p127 = por %p125, %p126
      %p128 = scmp.ne.s32.totalorder %s114, %s115
      %p129 = scmp.eq.s32.totalorder %s15, 2
      %p130 = por %p128, %p129
      %p132 = scmp.ne.s32.totalorder %s115, %s131
      %p133 = scmp.eq.s32.totalorder %s15, 0
      %p134 = por %p132, %p133
      %p135 = scmp.le.s32.totalorder 1, %s9
      %p136 = scmp.lt.s32.totalorder %s9, 4
      %p137 = pnand %p135, %p136
      %p138 = pneg %p137
      // Predicated region
      $region9: #{patch_fsl_forward.1} parent=5 // pred_check
        _
      $region10: #{patch_fsl_forward.1} parent=5 // pred_check_branch
        %140 = sbr.rel (%p137) target = $region12
      $region11: #{patch_fsl_forward.1} parent=5 // pred_region
        %s141 = ssub.s32 %s9, 1
        // Predicated region
        $region13: #{patch_fsl_forward.1} parent=11 // pred_check
          %p142 = pneg %p47
        $region14: #{patch_fsl_forward.1} parent=11 // pred_check_branch
          %144 = sbr.rel (%p142) target = $region16
        $region15: #{patch_fsl_forward.1} parent=11 // pred_region
          %s145 = smul.u32 10, %s19
          %p146 = scmp.lt.s32.totalorder %s145, 9
          %s147 = scalar_select %p146, %s145, 9
          %s148 = smul.addr %s147, 8
          %s149 = scalar_lea.vmem %s0, %s148
          %s150 = smul.u32 10, %s19
        $region16: #{patch_fsl_forward.1} parent=11 // pred_fallthru
          _
        // Predicated region
        $region17: #{patch_fsl_forward.1} parent=11 // pred_check
          %p151 = pneg %p99
        $region18: #{patch_fsl_forward.1} parent=11 // pred_check_branch
          %153 = sbr.rel (%p151) target = $region20
        $region19: #{patch_fsl_forward.1} parent=11 // pred_region
          %s154 = smul.u32 10, %s19
          %p155 = scmp.lt.s32.totalorder %s154, 9
          %s156 = scalar_select %p155, %s154, 9
          %s157 = smul.addr %s156, 8
          %s158 = scalar_lea.vmem %s2, %s157
          %s159 = smul.u32 10, %s19
        $region20: #{patch_fsl_forward.1} parent=11 // pred_fallthru
          _
      $region12: #{patch_fsl_forward.1} parent=5 // pred_fallthru
        _
      %p160 = scmp.lt.s32.totalorder %s9, 3
      // Predicated region
      $region21: #{patch_fsl_forward.1} parent=5 // pred_check
        %p161 = pneg %p160
      $region22: #{patch_fsl_forward.1} parent=5 // pred_check_branch
        %163 = sbr.rel (%p161) target = $region24
      $region23: #{patch_fsl_forward.1} parent=5 // pred_region
        // Predicated region
        $region25: #{patch_fsl_forward.1} parent=23 // pred_check
          %p164 = pneg %p67
        $region26: #{patch_fsl_forward.1} parent=23 // pred_check_branch
          %166 = sbr.rel (%p164) target = $region28
        $region27: #{patch_fsl_forward.1} parent=23 // pred_region
          %s167 = sand.u32 %s57, 1
          %s168 = sand.u32 %s57, 1
          %s169 = smul.addr %s168, 128
          %s170 = scalar_lea.vmem [#allocation2], %s169
          %s171 = smul.addr %s16, 8
          %s172 = scalar_lea.vmem %s1, %s171
          // Predicated region
          $region29: #{patch_fsl_forward.1} parent=27 // pred_check
            _
          $region30: #{patch_fsl_forward.1} parent=27 // pred_check_branch
            %174 = sbr.rel (0) target = $region32
          $region31: #{patch_fsl_forward.1} parent=27 // pred_region
            // Predicated region
            $region33: #{patch_fsl_forward.1} parent=31 // pred_check
              _
            $region34: #{patch_fsl_forward.1} parent=31 // pred_check_branch
              %176 = sbr.rel (0) target = $region36
            $region35: #{patch_fsl_forward.1} parent=31 // pred_region
              // Predicated region
              $region48: #{patch_fsl_forward.1} parent=35 // pred_check
                _
              $region49: #{patch_fsl_forward.1} parent=35 // pred_check_branch
                %221 = sbr.rel (0) target = $region51
              $region50: #{patch_fsl_forward.1} parent=35 // pred_region
                loop: start=0, step=1, limit=1
                $region52: #{patch_fsl_forward.1} parent=50 // loop_pre_header
                  _
                $region53: #{patch_fsl_forward.1} parent=50 // loop_header
                  %s223 = sphi 0, %s227
                  %p224 = scmp.ge.s32.totalorder %s223, 1
                  %s228 = sphi %s172, %s172
                  %s229 = sphi %s170, %s170
                $region54: #{patch_fsl_forward.1} parent=50 // loop_header_branch
                  %226 = sbr.rel (%p224) target = $region58
                $region55: #{patch_fsl_forward.1} parent=50 // loop_body
                  %v230 = vld [vmem:[%s228] sm:$0xff]
                  %231 = vst [vmem:[%s229] sm:$0xff] %v230
                  %v232 = vld [vmem:[%s228 + $0x18] sm:$0xff]
                  %233 = vst [vmem:[%s229 + $0x8] sm:$0xff] %v232
                  %v234 = vld [vmem:[%s228 + $0x30] sm:$0xff]
                  %235 = vst [vmem:[%s229 + $0x10] sm:$0xff] %v234
                  %v236 = vld [vmem:[%s228 + $0x48] sm:$0xff]
                  %237 = vst [vmem:[%s229 + $0x18] sm:$0xff] %v236
                  %v238 = vld [vmem:[%s228 + $0x60] sm:$0xff]
                  %239 = vst [vmem:[%s229 + $0x20] sm:$0xff] %v238
                  %v240 = vld [vmem:[%s228 + $0x78] sm:$0xff]
                  %241 = vst [vmem:[%s229 + $0x28] sm:$0xff] %v240
                  %v242 = vld [vmem:[%s228 + $0x90] sm:$0xff]
                  %243 = vst [vmem:[%s229 + $0x30] sm:$0xff] %v242
                  %v244 = vld [vmem:[%s228 + $0xa8] sm:$0xff]
                  %245 = vst [vmem:[%s229 + $0x38] sm:$0xff] %v244
                  %v246 = vld [vmem:[%s228 + $0xc0] sm:$0xff]
                  %247 = vst [vmem:[%s229 + $0x40] sm:$0xff] %v246
                  %v248 = vld [vmem:[%s228 + $0xd8] sm:$0xff]
                  %249 = vst [vmem:[%s229 + $0x48] sm:$0xff] %v248
                  %v250 = vld [vmem:[%s228 + $0xf0] sm:$0xff]
                  %251 = vst [vmem:[%s229 + $0x50] sm:$0xff] %v250
                  %v252 = vld [vmem:[%s228 + $0x108] sm:$0xff]
                  %253 = vst [vmem:[%s229 + $0x58] sm:$0xff] %v252
                  %v254 = vld [vmem:[%s228 + $0x120] sm:$0xff]
                  %255 = vst [vmem:[%s229 + $0x60] sm:$0xff] %v254
                  %v256 = vld [vmem:[%s228 + $0x138] sm:$0xff]
                  %257 = vst [vmem:[%s229 + $0x68] sm:$0xff] %v256
                  %v258 = vld [vmem:[%s228 + $0x150] sm:$0xff]
                  %259 = vst [vmem:[%s229 + $0x70] sm:$0xff] %v258
                  %v260 = vld [vmem:[%s228 + $0x168] sm:$0xff]
                  %261 = vst [vmem:[%s229 + $0x78] sm:$0xff] %v260
                $region56: #{patch_fsl_forward.1} parent=50 // loop_footer
                  %s227 = sadd.s32 1, %s223
                $region57: #{patch_fsl_forward.1} parent=50 // loop_footer_branch
                  %222 = sbr.rel target = $region53
                $region58: #{patch_fsl_forward.1} parent=50 // loop_exit
                  _
              $region51: #{patch_fsl_forward.1} parent=35 // pred_fallthru
                _
              // Predicated region
              $region59: #{patch_fsl_forward.1} parent=35 // pred_check
                _
              $region60: #{patch_fsl_forward.1} parent=35 // pred_check_branch
                %263 = sbr.rel target = $region62
              $region61: #{patch_fsl_forward.1} parent=35 // pred_region
                _
              $region62: #{patch_fsl_forward.1} parent=35 // pred_fallthru
                _
            $region36: #{patch_fsl_forward.1} parent=31 // pred_fallthru
              _
            // Predicated region
            $region37: #{patch_fsl_forward.1} parent=31 // pred_check
              _
            $region38: #{patch_fsl_forward.1} parent=31 // pred_check_branch
              %178 = sbr.rel target = $region40
            $region39: #{patch_fsl_forward.1} parent=31 // pred_region
              loop: start=0, step=1, limit=1
              $region41: #{patch_fsl_forward.1} parent=39 // loop_pre_header
                _
              $region42: #{patch_fsl_forward.1} parent=39 // loop_header
                %s181 = sphi 0, %s185
                %p182 = scmp.ge.s32.totalorder %s181, 1
                %s186 = sphi %s172, %s172
                %s187 = sphi %s170, %s170
              $region43: #{patch_fsl_forward.1} parent=39 // loop_header_branch
                %184 = sbr.rel (%p182) target = $region47
              $region44: #{patch_fsl_forward.1} parent=39 // loop_body
                %v188 = vld [vmem:[%s186] sm:$0xff]
                %189 = vst [vmem:[%s187] sm:$0xff] %v188
                %v190 = vld [vmem:[%s186 + $0x18] sm:$0xff]
                %191 = vst [vmem:[%s187 + $0x8] sm:$0xff] %v190
                %v192 = vld [vmem:[%s186 + $0x30] sm:$0xff]
                %193 = vst [vmem:[%s187 + $0x10] sm:$0xff] %v192
                %v194 = vld [vmem:[%s186 + $0x48] sm:$0xff]
                %195 = vst [vmem:[%s187 + $0x18] sm:$0xff] %v194
                %v196 = vld [vmem:[%s186 + $0x60] sm:$0xff]
                %197 = vst [vmem:[%s187 + $0x20] sm:$0xff] %v196
                %v198 = vld [vmem:[%s186 + $0x78] sm:$0xff]
                %199 = vst [vmem:[%s187 + $0x28] sm:$0xff] %v198
                %v200 = vld [vmem:[%s186 + $0x90] sm:$0xff]
                %201 = vst [vmem:[%s187 + $0x30] sm:$0xff] %v200
                %v202 = vld [vmem:[%s186 + $0xa8] sm:$0xff]
                %203 = vst [vmem:[%s187 + $0x38] sm:$0xff] %v202
                %v204 = vld [vmem:[%s186 + $0xc0] sm:$0xff]
                %205 = vst [vmem:[%s187 + $0x40] sm:$0xff] %v204
                %v206 = vld [vmem:[%s186 + $0xd8] sm:$0xff]
                %207 = vst [vmem:[%s187 + $0x48] sm:$0xff] %v206
                %v208 = vld [vmem:[%s186 + $0xf0] sm:$0xff]
                %209 = vst [vmem:[%s187 + $0x50] sm:$0xff] %v208
                %v210 = vld [vmem:[%s186 + $0x108] sm:$0xff]
                %211 = vst [vmem:[%s187 + $0x58] sm:$0xff] %v210
                %v212 = vld [vmem:[%s186 + $0x120] sm:$0xff]
                %213 = vst [vmem:[%s187 + $0x60] sm:$0xff] %v212
                %v214 = vld [vmem:[%s186 + $0x138] sm:$0xff]
                %215 = vst [vmem:[%s187 + $0x68] sm:$0xff] %v214
                %v216 = vld [vmem:[%s186 + $0x150] sm:$0xff]
                %217 = vst [vmem:[%s187 + $0x70] sm:$0xff] %v216
                %v218 = vld [vmem:[%s186 + $0x168] sm:$0xff]
                %219 = vst [vmem:[%s187 + $0x78] sm:$0xff] %v218
              $region45: #{patch_fsl_forward.1} parent=39 // loop_footer
                %s185 = sadd.s32 1, %s181
              $region46: #{patch_fsl_forward.1} parent=39 // loop_footer_branch
                %180 = sbr.rel target = $region42
              $region47: #{patch_fsl_forward.1} parent=39 // loop_exit
                _
            $region40: #{patch_fsl_forward.1} parent=31 // pred_fallthru
              _
          $region32: #{patch_fsl_forward.1} parent=27 // pred_fallthru
            _
          %264 = vnop
        $region28: #{patch_fsl_forward.1} parent=23 // pred_fallthru
          _
      $region24: #{patch_fsl_forward.1} parent=5 // pred_fallthru
        _
      %p265 = scmp.le.s32.totalorder 1, %s9
      %p266 = scmp.lt.s32.totalorder %s9, 4
      %p267 = pnand %p265, %p266
      %p268 = pneg %p267
      // Predicated region
      $region63: #{patch_fsl_forward.1} parent=5 // pred_check
        _
      $region64: #{patch_fsl_forward.1} parent=5 // pred_check_branch
        %270 = sbr.rel (%p267) target = $region66
      $region65: #{patch_fsl_forward.1} parent=5 // pred_region
        %s271 = ssub.s32 %s9, 1
        %s272 = sand.u32 %s60, 1
        %s273 = sand.u32 %s60, 1
        %s274 = smul.addr %s273, 128
        %s275 = scalar_lea.vmem [#allocation2], %s274
        // Predicated region
        $region67: #{patch_fsl_forward.1} parent=65 // pred_check
          %p276 = pneg %p73
        $region68: #{patch_fsl_forward.1} parent=65 // pred_check_branch
          %278 = sbr.rel (%p276) target = $region70
        $region69: #{patch_fsl_forward.1} parent=65 // pred_region
          _
        $region70: #{patch_fsl_forward.1} parent=65 // pred_fallthru
          _
        %s279 = smul.u32 10, %s19
        %p280 = scmp.lt.s32.totalorder %s279, 9
        %s281 = scalar_select %p280, %s279, 9
        %s282 = smul.addr %s281, 8
        %s283 = scalar_lea.vmem %s0, %s282
        %p284 = pneg %p47
        %p285 = pneg %p44
        %s286 = sand.u32 %s60, 1
        %s287 = sand.u32 %s60, 1
        %s288 = smul.addr %s287, 128
        %s289 = scalar_lea.vmem [#allocation2], %s288
        %p290 = pneg %p73
        %p291 = pneg %p70
        %s292 = smul.u32 10, %s19
        %p293 = scmp.lt.s32.totalorder %s292, 9
        %s294 = scalar_select %p293, %s292, 9
        %s295 = smul.addr %s294, 8
        %s296 = scalar_lea.vmem %s2, %s295
        %p297 = pneg %p99
        %p298 = pneg %p96
        %p299 = pneg %p127
        %p300 = pneg %p124
        %p301 = scmp.lt.s32.totalorder %s19, 0
        %s302 = scalar_select %p301, %s19, 0
        %p303 = scmp.lt.s32.totalorder %s18, 2
        %s304 = scalar_select %p303, %s18, 2
        %s305 = smul.addr %s302, 3
        %s306 = sadd.s32 %s304, %s305
        %s307 = smul.addr %s306, 8
        %s308 = scalar_lea.vmem %s3, %s307
        %s309 = smul.u32 10, %s19
        %p310 = scmp.lt.s32.totalorder %s309, 9
        %s311 = scalar_select %p310, %s309, 9
        %s312 = smul.addr %s311, 8
        %s313 = scalar_lea.vmem %s0, %s312
        %s314 = smul.u32 10, %s19
        %s315 = smul.u32 10, %s19
        %p316 = scmp.lt.s32.totalorder %s315, 9
        %s317 = scalar_select %p316, %s315, 9
        %s318 = smul.addr %s317, 8
        %s319 = scalar_lea.vmem %s2, %s318
        %s320 = smul.u32 10, %s19
        %p321 = scmp.lt.s32.totalorder %s19, 0
        %s322 = scalar_select %p321, %s19, 0
        %p323 = scmp.lt.s32.totalorder %s18, 2
        %s324 = scalar_select %p323, %s18, 2
        %s325 = smul.addr %s322, 3
        %s326 = sadd.s32 %s324, %s325
        %s327 = smul.addr %s326, 8
        %s328 = scalar_lea.vmem %s3, %s327
        %v329 = vld [vmem:[%s313] sm:$0xff]
        %v330 = vld [vmem:[%s313 + $0x8] sm:$0xff]
        %v331 = vld [vmem:[%s313 + $0x10] sm:$0xff]
        %v332 = vld [vmem:[%s313 + $0x18] sm:$0xff]
        %v333 = vld [vmem:[%s313 + $0x20] sm:$0xff]
        %v334 = vld [vmem:[%s313 + $0x28] sm:$0xff]
        %v335 = vld [vmem:[%s313 + $0x30] sm:$0xff]
        %v336 = vld [vmem:[%s313 + $0x38] sm:$0xff]
        %v337 = vld [vmem:[%s313 + $0x40] sm:$0xff]
        %v338 = vld [vmem:[%s313 + $0x48] sm:$0xff]
        %v339 = vld [vmem:[%s275] sm:$0xff]
        %v340 = vld [vmem:[%s275 + $0x8] sm:$0xff]
        %v341 = vld [vmem:[%s275 + $0x10] sm:$0xff]
        %v342 = vld [vmem:[%s275 + $0x18] sm:$0xff]
        %v343 = vld [vmem:[%s275 + $0x20] sm:$0xff]
        %v344 = vld [vmem:[%s275 + $0x28] sm:$0xff]
        %v345 = vld [vmem:[%s275 + $0x30] sm:$0xff]
        %v346 = vld [vmem:[%s275 + $0x38] sm:$0xff]
        %v347 = vld [vmem:[%s275 + $0x40] sm:$0xff]
        %v348 = vld [vmem:[%s275 + $0x48] sm:$0xff]
        %v349 = vld [vmem:[%s275 + $0x50] sm:$0xff]
        %v350 = vld [vmem:[%s275 + $0x58] sm:$0xff]
        %v351 = vld [vmem:[%s275 + $0x60] sm:$0xff]
        %v352 = vld [vmem:[%s275 + $0x68] sm:$0xff]
        %v353 = vld [vmem:[%s275 + $0x70] sm:$0xff]
        %v354 = vld [vmem:[%s275 + $0x78] sm:$0xff]
        %v355 = vld [vmem:[%s319] sm:$0xff]
        %v356 = vld [vmem:[%s319 + $0x8] sm:$0xff]
        %v357 = vld [vmem:[%s319 + $0x10] sm:$0xff]
        %v358 = vld [vmem:[%s319 + $0x18] sm:$0xff]
        %v359 = vld [vmem:[%s319 + $0x20] sm:$0xff]
        %v360 = vld [vmem:[%s319 + $0x28] sm:$0xff]
        %v361 = vld [vmem:[%s319 + $0x30] sm:$0xff]
        %v362 = vld [vmem:[%s319 + $0x38] sm:$0xff]
        %v363 = vld [vmem:[%s319 + $0x40] sm:$0xff]
        %v364 = vld [vmem:[%s319 + $0x48] sm:$0xff]
        %366 = vset.pattern.permute.xlu0 0
        %367 = vperm.xlu0 %366, %v355
        %v368 = vpop.permute.xlu0 %367
        %371 = vset.pattern.permute.xlu0 0
        %372 = vperm.xlu0 %371, %v356
        %v373 = vpop.permute.xlu0 %372
        %376 = vset.pattern.permute.xlu0 0
        %377 = vperm.xlu0 %376, %v357
        %v378 = vpop.permute.xlu0 %377
        %381 = vset.pattern.permute.xlu0 0
        %382 = vperm.xlu0 %381, %v358
        %v383 = vpop.permute.xlu0 %382
        %386 = vset.pattern.permute.xlu0 0
        %387 = vperm.xlu0 %386, %v359
        %v388 = vpop.permute.xlu0 %387
        %391 = vset.pattern.permute.xlu0 0
        %392 = vperm.xlu0 %391, %v360
        %v393 = vpop.permute.xlu0 %392
        %396 = vset.pattern.permute.xlu0 0
        %397 = vperm.xlu0 %396, %v361
        %v398 = vpop.permute.xlu0 %397
        %401 = vset.pattern.permute.xlu0 0
        %402 = vperm.xlu0 %401, %v362
        %v403 = vpop.permute.xlu0 %402
        %406 = vset.pattern.permute.xlu0 0
        %407 = vperm.xlu0 %406, %v363
        %v408 = vpop.permute.xlu0 %407
        %411 = vset.pattern.permute.xlu0 0
        %412 = vperm.xlu0 %411, %v364
        %v413 = vpop.permute.xlu0 %412
        %415 = vmatprep.subr.mxu0 0.0
        %416 = vmatpush1.msra.mxu0 %v339
        %417 = vmatprep.subr.mxu0 0.0
        %418 = vmatpush1.msra.mxu0 %v340
        %419 = vmatprep.subr.mxu0 0.0
        %420 = vmatpush1.msra.mxu0 %v341
        %421 = vmatprep.subr.mxu0 0.0
        %422 = vmatpush1.msra.mxu0 %v342
        %423 = vmatprep.subr.mxu0 0.0
        %424 = vmatpush1.msra.mxu0 %v343
        %425 = vmatprep.subr.mxu0 0.0
        %426 = vmatpush1.msra.mxu0 %v344
        %427 = vmatprep.subr.mxu0 0.0
        %428 = vmatpush1.msra.mxu0 %v345
        %429 = vmatprep.subr.mxu0 0.0
        %430 = vmatpush1.msra.mxu0 %v346
        %431 = vmatprep.subr.mxu0 0.0
        %432 = vmatpush1.msra.mxu0 %v347
        %433 = vmatprep.subr.mxu0 0.0
        %434 = vmatpush1.msra.mxu0 %v348
        %435 = vmatprep.subr.mxu0 0.0
        %436 = vmatpush1.msra.mxu0 %v349
        %437 = vmatprep.subr.mxu0 0.0
        %438 = vmatpush1.msra.mxu0 %v350
        %439 = vmatprep.subr.mxu0 0.0
        %440 = vmatpush1.msra.mxu0 %v351
        %441 = vmatprep.subr.mxu0 0.0
        %442 = vmatpush1.msra.mxu0 %v352
        %443 = vmatprep.subr.mxu0 0.0
        %444 = vmatpush1.msra.mxu0 %v353
        %445 = vmatprep.subr.mxu0 0.0
        %446 = vmatpush1.msra.mxu0 %v354
        %447 = vmatprep.subr.mxu0 0.0
        %448 = vmatpush1.msra.mxu0 0.0
        %449 = vmatprep.subr.mxu0 0.0
        %450 = vmatpush1.msra.mxu0 0.0
        %451 = vmatprep.subr.mxu0 0.0
        %452 = vmatpush1.msra.mxu0 0.0
        %453 = vmatprep.subr.mxu0 0.0
        %454 = vmatpush1.msra.mxu0 0.0
        %455 = vmatprep.subr.mxu0 0.0
        %456 = vmatpush1.msra.mxu0 0.0
        %457 = vmatprep.subr.mxu0 0.0
        %458 = vmatpush1.msra.mxu0 0.0
        %459 = vmatprep.subr.mxu0 0.0
        %460 = vmatpush1.msra.mxu0 0.0
        %461 = vmatprep.subr.mxu0 0.0
        %462 = vmatpush1.msra.mxu0 0.0
        %463 = vmatprep.subr.mxu0 0.0
        %464 = vmatpush1.msra.mxu0 0.0
        %465 = vmatprep.subr.mxu0 0.0
        %466 = vmatpush1.msra.mxu0 0.0
        %467 = vmatprep.subr.mxu0 0.0
        %468 = vmatpush1.msra.mxu0 0.0
        %469 = vmatprep.subr.mxu0 0.0
        %470 = vmatpush1.msra.mxu0 0.0
        %471 = vmatprep.subr.mxu0 0.0
        %472 = vmatpush1.msra.mxu0 0.0
        %473 = vmatprep.subr.mxu0 0.0
        %474 = vmatpush1.msra.mxu0 0.0
        %475 = vmatprep.subr.mxu0 0.0
        %476 = vmatpush1.msra.mxu0 0.0
        %477 = vmatprep.subr.mxu0 0.0
        %478 = vmatpush1.msra.mxu0 0.0
        %479 = vmatprep.mubr.f32.mxu0 0.0
        %480 = vmatmul.mubr.f32.gmra.mrb[0].mxu0 %v329
        %v481 = vpop.f32.mrb[0].mxu0
        %v482 = vadd.f32 %v368, %v481
        %v483 = vpop.f32.mrb[0].mxu0
        %484 = vmatprep.mubr.f32.mxu0 0.0
        %485 = vmatmul.mubr.f32.gmra.mrb[0].mxu0 %v330
        %v486 = vpop.f32.mrb[0].mxu0
        %v487 = vadd.f32 %v373, %v486
        %v488 = vpop.f32.mrb[0].mxu0
        %489 = vmatprep.mubr.f32.mxu0 0.0
        %490 = vmatmul.mubr.f32.gmra.mrb[0].mxu0 %v331
        %v491 = vpop.f32.mrb[0].mxu0
        %v492 = vadd.f32 %v378, %v491
        %v493 = vpop.f32.mrb[0].mxu0
        %494 = vmatprep.mubr.f32.mxu0 0.0
        %495 = vmatmul.mubr.f32.gmra.mrb[0].mxu0 %v332
        %v496 = vpop.f32.mrb[0].mxu0
        %v497 = vadd.f32 %v383, %v496
        %v498 = vpop.f32.mrb[0].mxu0
        %499 = vmatprep.mubr.f32.mxu0 0.0
        %500 = vmatmul.mubr.f32.gmra.mrb[0].mxu0 %v333
        %v501 = vpop.f32.mrb[0].mxu0
        %v502 = vadd.f32 %v388, %v501
        %v503 = vpop.f32.mrb[0].mxu0
        %504 = vmatprep.mubr.f32.mxu0 0.0
        %505 = vmatmul.mubr.f32.gmra.mrb[0].mxu0 %v334
        %v506 = vpop.f32.mrb[0].mxu0
        %v507 = vadd.f32 %v393, %v506
        %v508 = vpop.f32.mrb[0].mxu0
        %509 = vmatprep.mubr.f32.mxu0 0.0
        %510 = vmatmul.mubr.f32.gmra.mrb[0].mxu0 %v335
        %v511 = vpop.f32.mrb[0].mxu0
        %v512 = vadd.f32 %v398, %v511
        %v513 = vpop.f32.mrb[0].mxu0
        %514 = vmatprep.mubr.f32.mxu0 0.0
        %515 = vmatmul.mubr.f32.gmra.mrb[0].mxu0 %v336
        %v516 = vpop.f32.mrb[0].mxu0
        %v517 = vadd.f32 %v403, %v516
        %v518 = vpop.f32.mrb[0].mxu0
        %519 = vmatprep.mubr.f32.mxu0 0.0
        %520 = vmatmul.mubr.f32.gmra.mrb[0].mxu0 %v337
        %v521 = vpop.f32.mrb[0].mxu0
        %v522 = vadd.f32 %v408, %v521
        %v523 = vpop.f32.mrb[0].mxu0
        %524 = vmatprep.mubr.f32.mxu0 0.0
        %525 = vmatmul.mubr.f32.gmra.mrb[0].mxu0 %v338
        %v526 = vpop.f32.mrb[0].mxu0
        %v527 = vadd.f32 %v413, %v526
        %v528 = vpop.f32.mrb[0].mxu0
        %529 = vdwg.mxu0
        %v530 = vmul.f32 %v482, 1.442695
        %v531 = vpow.pop %v530
        %v532 = vmul.f32 %v487, 1.442695
        %v533 = vpow.pop %v532
        %v534 = vmul.f32 %v492, 1.442695
        %v535 = vpow.pop %v534
        %v536 = vmul.f32 %v497, 1.442695
        %v537 = vpow.pop %v536
        %v538 = vmul.f32 %v502, 1.442695
        %v539 = vpow.pop %v538
        %v540 = vmul.f32 %v507, 1.442695
        %v541 = vpow.pop %v540
        %v542 = vmul.f32 %v512, 1.442695
        %v543 = vpow.pop %v542
        %v544 = vmul.f32 %v517, 1.442695
        %v545 = vpow.pop %v544
        %v546 = vmul.f32 %v522, 1.442695
        %v547 = vpow.pop %v546
        %v548 = vmul.f32 %v527, 1.442695
        %v549 = vpow.pop %v548
        %v550 = vadd.f32 %v531, %v533
        %v551 = vrot.slane %v550, 4
        %v552 = vadd.f32 %v550, %v551
        %v553 = vrot.slane %v552, 2
        %v554 = vadd.f32 %v552, %v553
        %v555 = vrot.slane %v554, 1
        %v556 = vadd.f32 %v554, %v555
        %557 = vst [vmem:[%s328] sm:$0x1] %v556
        %v558 = vadd.f32 %v535, %v537
        %v559 = vrot.slane %v558, 4
        %v560 = vadd.f32 %v558, %v559
        %v561 = vrot.slane %v560, 2
        %v562 = vadd.f32 %v560, %v561
        %v563 = vrot.slane %v562, 1
        %v564 = vadd.f32 %v562, %v563
        %565 = vst [vmem:[%s328 + $0x1] sm:$0x1] %v564
        %v566 = vadd.f32 %v539, %v541
        %v567 = vrot.slane %v566, 4
        %v568 = vadd.f32 %v566, %v567
        %v569 = vrot.slane %v568, 2
        %v570 = vadd.f32 %v568, %v569
        %v571 = vrot.slane %v570, 1
        %v572 = vadd.f32 %v570, %v571
        %573 = vst [vmem:[%s328 + $0x2] sm:$0x1] %v572
        %v574 = vadd.f32 %v543, %v545
        %v575 = vrot.slane %v574, 4
        %v576 = vadd.f32 %v574, %v575
        %v577 = vrot.slane %v576, 2
        %v578 = vadd.f32 %v576, %v577
        %v579 = vrot.slane %v578, 1
        %v580 = vadd.f32 %v578, %v579
        %581 = vst [vmem:[%s328 + $0x3] sm:$0x1] %v580
        %v582 = vadd.f32 %v547, %v549
        %v583 = vrot.slane %v582, 4
        %v584 = vadd.f32 %v582, %v583
        %v585 = vrot.slane %v584, 2
        %v586 = vadd.f32 %v584, %v585
        %v587 = vrot.slane %v586, 1
        %v588 = vadd.f32 %v586, %v587
        %589 = vst [vmem:[%s328 + $0x4] sm:$0x1] %v588
        %p590 = scmp.lt.s32.totalorder %s19, 0
        %s591 = scalar_select %p590, %s19, 0
        %p592 = scmp.lt.s32.totalorder %s18, 2
        %s593 = scalar_select %p592, %s18, 2
        %s594 = smul.addr %s591, 3
        %s595 = sadd.s32 %s593, %s594
        %s596 = smul.addr %s595, 8
        %s597 = scalar_lea.vmem %s3, %s596
        // Predicated region
        $region71: #{patch_fsl_forward.1} parent=65 // pred_check
          %p598 = pneg %p124
        $region72: #{patch_fsl_forward.1} parent=65 // pred_check_branch
          %600 = sbr.rel (%p598) target = $region74
        $region73: #{patch_fsl_forward.1} parent=65 // pred_region
          _
        $region74: #{patch_fsl_forward.1} parent=65 // pred_fallthru
          _
      $region66: #{patch_fsl_forward.1} parent=5 // pred_fallthru
        _
      %p601 = scmp.le.s32.totalorder 2, %s9
      // Predicated region
      $region75: #{patch_fsl_forward.1} parent=5 // pred_check
        %p602 = pneg %p601
      $region76: #{patch_fsl_forward.1} parent=5 // pred_check_branch
        %604 = sbr.rel (%p602) target = $region78
      $region77: #{patch_fsl_forward.1} parent=5 // pred_region
        %s605 = ssub.s32 %s9, 2
        // Predicated region
        $region79: #{patch_fsl_forward.1} parent=77 // pred_check
          %p606 = pneg %p130
        $region80: #{patch_fsl_forward.1} parent=77 // pred_check_branch
          %608 = sbr.rel (%p606) target = $region82
        $region81: #{patch_fsl_forward.1} parent=77 // pred_region
          %p609 = scmp.lt.s32.totalorder %s21, 0
          %s610 = scalar_select %p609, %s21, 0
          %p611 = scmp.lt.s32.totalorder %s20, 2
          %s612 = scalar_select %p611, %s20, 2
          %s613 = smul.addr %s610, 3
          %s614 = sadd.s32 %s612, %s613
          %s615 = smul.addr %s614, 8
          %s616 = scalar_lea.vmem %s3, %s615
        $region82: #{patch_fsl_forward.1} parent=77 // pred_fallthru
          _
      $region78: #{patch_fsl_forward.1} parent=5 // pred_fallthru
        _
    $region6: #{patch_fsl_forward.1} parent=1 // loop_footer
      %s13 = sadd.s32 1, %s9
    $region7: #{patch_fsl_forward.1} parent=1 // loop_footer_branch
      %8 = sbr.rel target = $region3
    $region8: #{patch_fsl_forward.1} parent=1 // loop_exit
      _

</llo_original>
